<compile_context>
chip_gen: v5e
topology: v5e:2x2
jax: 0.10.0
libtpu: 0.0.40
codegen_flags: <defaults>
</compile_context>

<pallas_src>
import functools

import jax
import jax.numpy as jnp
from jax.experimental import pallas as pl
from jax.experimental.pallas import tpu as pltpu


def _round_up(v, m):
    return ((v + m - 1) // m) * m


def _query_vmem_capacity_bytes():
    """One-time (import-time) VMEM capacity query; conservative fallback."""
    try:
        info = pltpu.get_tpu_info()
        cap = getattr(info, "vmem_capacity_bytes", None)
        if cap:
            return int(cap)
    except Exception:
        pass
    return 64 << 20  # conservative default: v7x per-TensorCore VMEM


_VMEM_CAP = _query_vmem_capacity_bytes()


def _nbytes(a):
    return int(a.size) * jnp.dtype(a.dtype).itemsize


def _mlp_kernel(x_ref, w1_ref, b1_ref, w2_ref, b2_ref, o_ref):
    # Hidden layer: Linear + ReLU (MXU matmul, f32 accumulation).
    h = jnp.dot(x_ref[...], w1_ref[...], preferred_element_type=jnp.float32)
    h = h + b1_ref[...]          # b1 is (1, c_hidden), broadcasts over rows
    h = jnp.maximum(h, 0.0)      # ReLU
    # TODO(synk): nn.Dropout(dp_rate) is identity at inference time (model.eval());
    # training-mode stochastic masking (pltpu.prng_*) is intentionally not applied.
    # Output layer: Linear.  astype is a no-op for f32 weights; it downcasts the
    # hidden activations only if the weights are stored in bf16.
    o = jnp.dot(h.astype(w2_ref.dtype), w2_ref[...],
                preferred_element_type=jnp.float32)
    o = o + b2_ref[...]          # b2 is (1, c_out)
    o_ref[...] = o.astype(o_ref.dtype)


def _replicated_spec(shape, single_buffer):
    if single_buffer:
        # Constant index_map -> double-buffering is pure VMEM waste.
        return pl.BlockSpec(shape, lambda i: (0, 0), pipeline_mode=pl.Buffered(1))
    return pl.BlockSpec(shape, lambda i: (0, 0))


@functools.partial(jax.jit, static_argnames=("single_buffer",))
def _mlp_forward_impl(x, w1, b1, w2, b2, *, single_buffer=True):
    """x: [N, c_in]; w1: [c_in, c_hidden]; b1: [1, c_hidden];
    w2: [c_hidden, c_out]; b2: [1, c_out]  ->  [N, c_out]"""
    n, c_in = x.shape
    c_hidden = w1.shape[1]
    c_out = w2.shape[1]
    dtype = x.dtype
    bpe_x = jnp.dtype(dtype).itemsize
    bpe_w2 = jnp.dtype(w2.dtype).itemsize

    # Parameter bytes, each operand with its own itemsize.
    w_bytes = _nbytes(w1) + _nbytes(b1) + _nbytes(w2) + _nbytes(b2)
    if not single_buffer:
        w_bytes *= 2  # default double-buffering of replicated operands

    # ---- Row-tile sizing from the VMEM budget --------------------------------
    # Per-row VMEM footprint: double-buffered x/out tiles + f32 hidden
    # intermediate + possible astype copy feeding the second matmul.
    per_row = (2 * (c_in + c_out) * bpe_x) + c_hidden * 4 + c_hidden * bpe_w2
    target = max(16 << 20, int(_VMEM_CAP * 0.4))
    if target > w_bytes:
        tm_budget = max(8, (target - w_bytes) // per_row)
    else:
        tm_budget = 8
    if tm_budget >= 256:
        tm_budget = (tm_budget // 256) * 256
    else:
        tm_budget = max(8, (tm_budget // 8) * 8)

    tm = min(int(tm_budget), _round_up(n, 8))
    # v7x has 2 TensorCores: make sure the (parallel) row grid has >= 2 steps
    # whenever N allows it, so both cores get work.
    while pl.cdiv(n, tm) < 2 and tm > 8:
        tm = max(8, _round_up(tm // 2, 8))
    grid = (pl.cdiv(n, tm),)

    # ---- VMEM budget / limit --------------------------------------------------
    vmem_need = (2 * tm * c_in * bpe_x        # x tiles (double-buffered)
                 + 2 * tm * c_out * bpe_x     # out tiles (double-buffered)
                 + w_bytes                    # parameters
                 + tm * c_hidden * 4          # f32 hidden intermediate
                 + tm * c_hidden * bpe_w2)    # astype copy before 2nd matmul
    vmem_limit = int(min(max(2 * vmem_need, 16 << 20), int(_VMEM_CAP * 0.85)))

    flops = 2 * n * (c_in * c_hidden + c_hidden * c_out)
    bytes_accessed = (n * c_in + n * c_out) * bpe_x + w_bytes

    return pl.pallas_call(
        _mlp_kernel,
        out_shape=jax.ShapeDtypeStruct((n, c_out), dtype),
        grid_spec=pltpu.PrefetchScalarGridSpec(
            num_scalar_prefetch=0,
            grid=grid,
            in_specs=[
                # Row tile of activations (pipelined; last tile may be partial:
                # padded reads + masked stores handled by Pallas).
                pl.BlockSpec((tm, c_in), lambda i: (i, 0)),
                # Replicated parameters, loaded as full-array blocks.
                _replicated_spec((c_in, c_hidden), single_buffer),
                _replicated_spec((1, c_hidden), single_buffer),
                _replicated_spec((c_hidden, c_out), single_buffer),
                _replicated_spec((1, c_out), single_buffer),
            ],
            out_specs=pl.BlockSpec((tm, c_out), lambda i: (i, 0)),
        ),
        compiler_params=pltpu.CompilerParams(
            dimension_semantics=("parallel",),
            vmem_limit_bytes=vmem_limit),
        cost_estimate=pl.CostEstimate(
            flops=flops, transcendentals=0, bytes_accessed=bytes_accessed),
    )(x, w1, b1, w2, b2)


def mlp_forward(x, w1, b1, w2, b2):
    try:
        return _mlp_forward_impl(x, w1, b1, w2, b2, single_buffer=True)
    except Exception:
        # Some Pallas versions reject pipeline_mode=pl.Buffered(1); fall back to
        # default (double-buffered) replicated operands — identical numerics.
        return _mlp_forward_impl(x, w1, b1, w2, b2, single_buffer=False)


def init_params(key, c_in, c_hidden, c_out, dtype=jnp.float32):
    """Deterministic parameter init mimicking nn.Linear default
    (uniform +-1/sqrt(fan_in)).  Weights stored already transposed to [in, out]."""
    k1, k2, k3, k4 = jax.random.split(key, 4)
    lim1 = 1.0 / jnp.sqrt(c_in)
    lim2 = 1.0 / jnp.sqrt(c_hidden)
    w1 = jax.random.uniform(k1, (c_in, c_hidden), dtype, -lim1, lim1)
    b1 = jax.random.uniform(k2, (1, c_hidden), dtype, -lim1, lim1)
    w2 = jax.random.uniform(k3, (c_hidden, c_out), dtype, -lim2, lim2)
    b2 = jax.random.uniform(k4, (1, c_out), dtype, -lim2, lim2)
    return w1, b1, w2, b2


def _ref(x, w1, b1, w2, b2):
    # Pure-JAX reference (dropout = identity at inference).
    return jnp.maximum(x @ w1 + b1, 0.0) @ w2 + b2


if __name__ == "__main__":
    # Small shapes consistent with the module: num_layers=2 MLP.
    N, C_IN, C_HIDDEN, C_OUT = 8, 16, 32, 8

    key = jax.random.PRNGKey(0)
    kx, kp = jax.random.split(key)
    x = jax.random.normal(kx, (N, C_IN), jnp.float32)
    w1, b1, w2, b2 = init_params(kp, C_IN, C_HIDDEN, C_OUT)

    out = jax.block_until_ready(mlp_forward(x, w1, b1, w2, b2))
    assert out.shape == (N, C_OUT)
    assert jnp.allclose(out, _ref(x, w1, b1, w2, b2), atol=1e-5, rtol=1e-5)

    # Exercise the ragged-N path (N not a multiple of the row tile) to validate
    # the partial-block (padded read / masked store) handling — no host-side
    # padding or slicing involved.
    N2 = 37
    x2 = jax.random.normal(jax.random.PRNGKey(1), (N2, C_IN), jnp.float32)
    out2 = jax.block_until_ready(mlp_forward(x2, w1, b1, w2, b2))
    assert out2.shape == (N2, C_OUT)
    assert jnp.allclose(out2, _ref(x2, w1, b1, w2, b2), atol=1e-5, rtol=1e-5)

    print("KERNEL_OK")
</pallas_src>

<mosaic_0001>
module attributes {stable_mosaic.version = 11 : i64} {
  func.func @_mlp_kernel(%arg0: i32, %arg1: memref<8x16xf32, #tpu.memory_space<vmem>>, %arg2: memref<16x32xf32, #tpu.memory_space<vmem>>, %arg3: memref<1x32xf32, #tpu.memory_space<vmem>>, %arg4: memref<32x8xf32, #tpu.memory_space<vmem>>, %arg5: memref<1x8xf32, #tpu.memory_space<vmem>>, %arg6: memref<8x8xf32, #tpu.memory_space<vmem>>) attributes {dimension_semantics = [#tpu.dimension_semantics<parallel>], iteration_bounds = array<i64: 1>, scalar_prefetch = 0 : i64, scratch_operands = 0 : i64, tpu.core_type = #tpu.core_type<tc>, window_params = [{transform_indices = @transform_0, window_bounds = array<i64: 8, 16>}, {pipeline_mode = #tpu.pipeline_mode<synchronous>, transform_indices = @transform_1, window_bounds = array<i64: 16, 32>}, {pipeline_mode = #tpu.pipeline_mode<synchronous>, transform_indices = @transform_2, window_bounds = array<i64: 1, 32>}, {pipeline_mode = #tpu.pipeline_mode<synchronous>, transform_indices = @transform_3, window_bounds = array<i64: 32, 8>}, {pipeline_mode = #tpu.pipeline_mode<synchronous>, transform_indices = @transform_4, window_bounds = array<i64: 1, 8>}, {transform_indices = @transform_5, window_bounds = array<i64: 8, 8>}]} {
    %c0 = arith.constant 0 : index
    %c0_0 = arith.constant 0 : index
    %0 = vector.load %arg1[%c0, %c0_0] : memref<8x16xf32, #tpu.memory_space<vmem>>, vector<8x16xf32>
    %c0_1 = arith.constant 0 : index
    %c0_2 = arith.constant 0 : index
    %1 = vector.load %arg2[%c0_1, %c0_2] : memref<16x32xf32, #tpu.memory_space<vmem>>, vector<16x32xf32>
    %cst = arith.constant dense<0.000000e+00> : vector<8x32xf32>
    %2 = tpu.matmul %0, %1, %cst {dimension_numbers = #tpu.dot_dimension_numbers<[1], [0], [0], [1], [0, 0, 1, 1], [], []>} : vector<8x16xf32>, vector<16x32xf32>, vector<8x32xf32> -> vector<8x32xf32>
    %c0_3 = arith.constant 0 : index
    %c0_4 = arith.constant 0 : index
    %3 = vector.load %arg3[%c0_3, %c0_4] : memref<1x32xf32, #tpu.memory_space<vmem>>, vector<1x32xf32>
    %4 = vector.broadcast %3 : vector<1x32xf32> to vector<8x32xf32>
    %5 = arith.addf %2, %4 : vector<8x32xf32>
    %cst_5 = arith.constant 0.000000e+00 : f32
    %6 = vector.broadcast %cst_5 : f32 to vector<8x32xf32>
    %7 = arith.maximumf %5, %6 : vector<8x32xf32>
    %c0_6 = arith.constant 0 : index
    %c0_7 = arith.constant 0 : index
    %8 = vector.load %arg4[%c0_6, %c0_7] : memref<32x8xf32, #tpu.memory_space<vmem>>, vector<32x8xf32>
    %cst_8 = arith.constant dense<0.000000e+00> : vector<8x8xf32>
    %9 = tpu.matmul %7, %8, %cst_8 {dimension_numbers = #tpu.dot_dimension_numbers<[1], [0], [0], [1], [0, 0, 1, 1], [], []>} : vector<8x32xf32>, vector<32x8xf32>, vector<8x8xf32> -> vector<8x8xf32>
    %c0_9 = arith.constant 0 : index
    %c0_10 = arith.constant 0 : index
    %10 = vector.load %arg5[%c0_9, %c0_10] : memref<1x8xf32, #tpu.memory_space<vmem>>, vector<1x8xf32>
    %11 = vector.broadcast %10 : vector<1x8xf32> to vector<8x8xf32>
    %12 = arith.addf %9, %11 : vector<8x8xf32>
    %c0_11 = arith.constant 0 : index
    %c0_12 = arith.constant 0 : index
    %13 = vector.load %arg6[%c0_11, %c0_12] : memref<8x8xf32, #tpu.memory_space<vmem>>, vector<8x8xf32>
    tpu.vector_store %arg6[%c0_11, %c0_12], %12 {strides = array<i32>} : memref<8x8xf32, #tpu.memory_space<vmem>>, vector<8x8xf32>,
    return
  }
  func.func @transform_0(%arg0: i32) -> (i32, i32) {
    %c0_i32 = arith.constant 0 : i32
    %c0_i32_0 = arith.constant 0 : i32
    return %arg0, %c0_i32 : i32, i32
  }
  func.func @transform_1(%arg0: i32) -> (i32, i32) {
    %c0_i32 = arith.constant 0 : i32
    %c0_i32_0 = arith.constant 0 : i32
    %c0_i32_1 = arith.constant 0 : i32
    return %c0_i32, %c0_i32_0 : i32, i32
  }
  func.func @transform_2(%arg0: i32) -> (i32, i32) {
    %c0_i32 = arith.constant 0 : i32
    %c0_i32_0 = arith.constant 0 : i32
    %c0_i32_1 = arith.constant 0 : i32
    return %c0_i32, %c0_i32_0 : i32, i32
  }
  func.func @transform_3(%arg0: i32) -> (i32, i32) {
    %c0_i32 = arith.constant 0 : i32
    %c0_i32_0 = arith.constant 0 : i32
    %c0_i32_1 = arith.constant 0 : i32
    return %c0_i32, %c0_i32_0 : i32, i32
  }
  func.func @transform_4(%arg0: i32) -> (i32, i32) {
    %c0_i32 = arith.constant 0 : i32
    %c0_i32_0 = arith.constant 0 : i32
    %c0_i32_1 = arith.constant 0 : i32
    return %c0_i32, %c0_i32_0 : i32, i32
  }
  func.func @transform_5(%arg0: i32) -> (i32, i32) {
    %c0_i32 = arith.constant 0 : i32
    %c0_i32_0 = arith.constant 0 : i32
    return %arg0, %c0_i32 : i32, i32
  }
}

module attributes {stable_mosaic.version = 11 : i64} {
  func.func @_mlp_kernel(%arg0: i32, %arg1: memref<8x16xf32, #tpu.memory_space<vmem>>, %arg2: memref<16x32xf32, #tpu.memory_space<vmem>>, %arg3: memref<1x32xf32, #tpu.memory_space<vmem>>, %arg4: memref<32x8xf32, #tpu.memory_space<vmem>>, %arg5: memref<1x8xf32, #tpu.memory_space<vmem>>, %arg6: memref<8x8xf32, #tpu.memory_space<vmem>>) attributes {dimension_semantics = [#tpu.dimension_semantics<parallel>], iteration_bounds = array<i64: 1>, scalar_prefetch = 0 : i64, scratch_operands = 0 : i64, tpu.core_type = #tpu.core_type<tc>, window_params = [{transform_indices = @transform_0, window_bounds = array<i64: 8, 16>}, {pipeline_mode = #tpu.pipeline_mode<synchronous>, transform_indices = @transform_1, window_bounds = array<i64: 16, 32>}, {pipeline_mode = #tpu.pipeline_mode<synchronous>, transform_indices = @transform_2, window_bounds = array<i64: 1, 32>}, {pipeline_mode = #tpu.pipeline_mode<synchronous>, transform_indices = @transform_3, window_bounds = array<i64: 32, 8>}, {pipeline_mode = #tpu.pipeline_mode<synchronous>, transform_indices = @transform_4, window_bounds = array<i64: 1, 8>}, {transform_indices = @transform_5, window_bounds = array<i64: 8, 8>}]} {
    %c0 = arith.constant 0 : index
    %c0_0 = arith.constant 0 : index
    %0 = vector.load %arg1[%c0, %c0_0] : memref<8x16xf32, #tpu.memory_space<vmem>>, vector<8x16xf32>
    %c0_1 = arith.constant 0 : index
    %c0_2 = arith.constant 0 : index
    %1 = vector.load %arg2[%c0_1, %c0_2] : memref<16x32xf32, #tpu.memory_space<vmem>>, vector<16x32xf32>
    %cst = arith.constant dense<0.000000e+00> : vector<8x32xf32>
    %2 = tpu.matmul %0, %1, %cst {dimension_numbers = #tpu.dot_dimension_numbers<[1], [0], [0], [1], [0, 0, 1, 1], [], []>} : vector<8x16xf32>, vector<16x32xf32>, vector<8x32xf32> -> vector<8x32xf32>
    %c0_3 = arith.constant 0 : index
    %c0_4 = arith.constant 0 : index
    %3 = vector.load %arg3[%c0_3, %c0_4] : memref<1x32xf32, #tpu.memory_space<vmem>>, vector<1x32xf32>
    %4 = vector.broadcast %3 : vector<1x32xf32> to vector<8x32xf32>
    %5 = arith.addf %2, %4 : vector<8x32xf32>
    %cst_5 = arith.constant 0.000000e+00 : f32
    %6 = vector.broadcast %cst_5 : f32 to vector<8x32xf32>
    %7 = arith.maximumf %5, %6 : vector<8x32xf32>
    %c0_6 = arith.constant 0 : index
    %c0_7 = arith.constant 0 : index
    %8 = vector.load %arg4[%c0_6, %c0_7] : memref<32x8xf32, #tpu.memory_space<vmem>>, vector<32x8xf32>
    %cst_8 = arith.constant dense<0.000000e+00> : vector<8x8xf32>
    %9 = tpu.matmul %7, %8, %cst_8 {dimension_numbers = #tpu.dot_dimension_numbers<[1], [0], [0], [1], [0, 0, 1, 1], [], []>} : vector<8x32xf32>, vector<32x8xf32>, vector<8x8xf32> -> vector<8x8xf32>
    %c0_9 = arith.constant 0 : index
    %c0_10 = arith.constant 0 : index
    %10 = vector.load %arg5[%c0_9, %c0_10] : memref<1x8xf32, #tpu.memory_space<vmem>>, vector<1x8xf32>
    %11 = vector.broadcast %10 : vector<1x8xf32> to vector<8x8xf32>
    %12 = arith.addf %9, %11 : vector<8x8xf32>
    %c0_11 = arith.constant 0 : index
    %c0_12 = arith.constant 0 : index
    %13 = vector.load %arg6[%c0_11, %c0_12] : memref<8x8xf32, #tpu.memory_space<vmem>>, vector<8x8xf32>
    tpu.vector_store %arg6[%c0_11, %c0_12], %12 {strides = array<i32>} : memref<8x8xf32, #tpu.memory_space<vmem>>, vector<8x8xf32>,
    return
  }
  func.func @transform_0(%arg0: i32) -> (i32, i32) {
    %c0_i32 = arith.constant 0 : i32
    %c0_i32_0 = arith.constant 0 : i32
    return %arg0, %c0_i32 : i32, i32
  }
  func.func @transform_1(%arg0: i32) -> (i32, i32) {
    %c0_i32 = arith.constant 0 : i32
    %c0_i32_0 = arith.constant 0 : i32
    %c0_i32_1 = arith.constant 0 : i32
    return %c0_i32, %c0_i32_0 : i32, i32
  }
  func.func @transform_2(%arg0: i32) -> (i32, i32) {
    %c0_i32 = arith.constant 0 : i32
    %c0_i32_0 = arith.constant 0 : i32
    %c0_i32_1 = arith.constant 0 : i32
    return %c0_i32, %c0_i32_0 : i32, i32
  }
  func.func @transform_3(%arg0: i32) -> (i32, i32) {
    %c0_i32 = arith.constant 0 : i32
    %c0_i32_0 = arith.constant 0 : i32
    %c0_i32_1 = arith.constant 0 : i32
    return %c0_i32, %c0_i32_0 : i32, i32
  }
  func.func @transform_4(%arg0: i32) -> (i32, i32) {
    %c0_i32 = arith.constant 0 : i32
    %c0_i32_0 = arith.constant 0 : i32
    %c0_i32_1 = arith.constant 0 : i32
    return %c0_i32, %c0_i32_0 : i32, i32
  }
  func.func @transform_5(%arg0: i32) -> (i32, i32) {
    %c0_i32 = arith.constant 0 : i32
    %c0_i32_0 = arith.constant 0 : i32
    return %arg0, %c0_i32 : i32, i32
  }
}

</mosaic_0001>

<llo_original>
// kernel: _mlp_forward_impl.1
$region0: #{_mlp_forward_impl.1}
  #allocation0 [shape = 'u32[]', space=smem, size = 0x4, offset = 0x4, fixed_abs, tag = 'smem constant byte address 0x4 - core index']
  #allocation1 [shape = 'u32[72,128]{1,0:T(1,128)}', space=vmem, size = 0x9000, scoped, tag = 'internal scratch']
  %s0 = inlined_call_operand.vmem [shape: f32[8,16], index: 0, kind: input, shape index: {}]
  %s1 = inlined_call_operand.vmem [shape: f32[16,32], index: 1, kind: input, shape index: {}]
  %s2 = inlined_call_operand.vmem [shape: f32[1,32], index: 2, kind: input, shape index: {}]
  %s3 = inlined_call_operand.vmem [shape: f32[32,8], index: 3, kind: input, shape index: {}]
  %s4 = inlined_call_operand.vmem [shape: f32[1,8], index: 4, kind: input, shape index: {}]
  %s5 = inlined_call_operand.hbm [shape: f32[8,8], index: 5, kind: output, shape index: {}]
  %s6 = sld [smem:[#allocation0]]
  $region30: #{_mlp_forward_impl.1} parent=0
    _
  %s8 = ssub.s32 1, %s6
  %s9 = scalar_select 0, %s8, %s6
  $region1: #{_mlp_forward_impl.1} parent=0
    #allocation2 [shape = 'u8[4096]{0}', space=vmem, size = 0x1000, scoped, tag = 'output window, operand 0, single buffered']
    #allocation3 [shape = 's32[1]{0}', space=sflag, size = 0x4, scoped, tag = 'scoped memory for _mlp_forward_impl.1']
    %10 = vsyncpa [#allocation3], 0
    // Predicated region
    $region2: #{_mlp_forward_impl.1} parent=1 // pred_check
      _
    $region3: #{_mlp_forward_impl.1} parent=1 // pred_check_branch
      %12 = sbr.rel (0) target = $region5
    $region4: #{_mlp_forward_impl.1} parent=1 // pred_region
      _
    $region5: #{_mlp_forward_impl.1} parent=1 // pred_fallthru
      _
    // Predicated region
    $region6: #{_mlp_forward_impl.1} parent=1 // pred_check
      _
    $region7: #{_mlp_forward_impl.1} parent=1 // pred_check_branch
      %14 = sbr.rel (0) target = $region9
    $region8: #{_mlp_forward_impl.1} parent=1 // pred_region
      _
    $region9: #{_mlp_forward_impl.1} parent=1 // pred_fallthru
      _
    // Predicated region
    $region10: #{_mlp_forward_impl.1} parent=1 // pred_check
      _
    $region11: #{_mlp_forward_impl.1} parent=1 // pred_check_branch
      %16 = sbr.rel (0) target = $region13
    $region12: #{_mlp_forward_impl.1} parent=1 // pred_region
      _
    $region13: #{_mlp_forward_impl.1} parent=1 // pred_fallthru
      _
    // Predicated region
    $region14: #{_mlp_forward_impl.1} parent=1 // pred_check
      _
    $region15: #{_mlp_forward_impl.1} parent=1 // pred_check_branch
      %18 = sbr.rel (0) target = $region17
    $region16: #{_mlp_forward_impl.1} parent=1 // pred_region
      _
    $region17: #{_mlp_forward_impl.1} parent=1 // pred_fallthru
      _
    // Predicated region
    $region18: #{_mlp_forward_impl.1} parent=1 // pred_check
      _
    $region19: #{_mlp_forward_impl.1} parent=1 // pred_check_branch
      %20 = sbr.rel (0) target = $region21
    $region20: #{_mlp_forward_impl.1} parent=1 // pred_region
      _
    $region21: #{_mlp_forward_impl.1} parent=1 // pred_fallthru
      _
    %v21 = vld [vmem:[%s0] sm:$0xff]
    %v22 = vld [vmem:[%s1] sm:$0xff]
    %v23 = vld [vmem:[%s1 + $0x8] sm:$0xff]
    %v24 = vld [vmem:[%s2] sm:$0x1]
    %v26 = vperm.slane %v24, 0
    %vm28 = vcmask 130048
    %v30 = vsel %vm28, %v21, 0
    %32 = vmatpush.msra.mxu0 0.0
    %33 = vmatpush.msra.mxu0 0.0
    %34 = vmatpush.msra.mxu0 0.0
    %35 = vmatpush.msra.mxu0 0.0
    %36 = vmatpush.msra.mxu0 0.0
    %37 = vmatpush.msra.mxu0 0.0
    %38 = vmatpush.msra.mxu0 0.0
    %39 = vmatpush.msra.mxu0 0.0
    %40 = vmatpush.msra.mxu0 0.0
    %41 = vmatpush.msra.mxu0 0.0
    %42 = vmatpush.msra.mxu0 0.0
    %43 = vmatpush.msra.mxu0 0.0
    %44 = vmatpush.msra.mxu0 0.0
    %45 = vmatpush.msra.mxu0 0.0
    %46 = vmatpush.msra.mxu0 %v23
    %47 = vmatpush.msra.mxu0 %v22
    %48 = vmatmul.f32.gmra.mxu0 %v30
    %v49 = vpop.f32.mrf.mxu0
    %v50 = vadd.f32 %v26, %v49
    %51 = vdwg.mxu0
    %v52 = vmax.f32 %v50, 0.0
    %v53 = vld [vmem:[%s3] sm:$0xff]
    %v54 = vld [vmem:[%s3 + $0x8] sm:$0xff]
    %v55 = vld [vmem:[%s3 + $0x10] sm:$0xff]
    %v56 = vld [vmem:[%s3 + $0x18] sm:$0xff]
    %v57 = vld [vmem:[%s4] sm:$0x1]
    %v59 = vperm.slane %v57, 0
    %vm61 = vcmask 261120
    %v63 = vsel %vm61, %v52, 0
    %65 = vmatpush.msra.mxu0 0.0
    %66 = vmatpush.msra.mxu0 0.0
    %67 = vmatpush.msra.mxu0 0.0
    %68 = vmatpush.msra.mxu0 0.0
    %69 = vmatpush.msra.mxu0 0.0
    %70 = vmatpush.msra.mxu0 0.0
    %71 = vmatpush.msra.mxu0 0.0
    %72 = vmatpush.msra.mxu0 0.0
    %73 = vmatpush.msra.mxu0 0.0
    %74 = vmatpush.msra.mxu0 0.0
    %75 = vmatpush.msra.mxu0 0.0
    %76 = vmatpush.msra.mxu0 0.0
    %77 = vmatpush.msra.mxu0 %v56
    %78 = vmatpush.msra.mxu0 %v55
    %79 = vmatpush.msra.mxu0 %v54
    %80 = vmatpush.msra.mxu0 %v53
    %81 = vmatmul.f32.gmra.mxu0 %v63
    %v82 = vpop.f32.mrf.mxu0
    %v83 = vadd.f32 %v59, %v82
    %84 = vdwg.mxu0
    %vm85 = vcmask 64512
    %86 = vst.msk [vmem:[#allocation2] sm:$0xff] %vm85, %v83
    // Predicated region
    $region22: #{_mlp_forward_impl.1} parent=1 // pred_check
      _
    $region23: #{_mlp_forward_impl.1} parent=1 // pred_check_branch
      %88 = sbr.rel (0) target = $region25
    $region24: #{_mlp_forward_impl.1} parent=1 // pred_region
      %90 = vsyncadd [#allocation3], 0
      %s92 = sshll.u32 [#allocation2], 4
      %s93 = int_to_ptr.vmem [resolvable:$true] %s92
      %s94 = sshll.u32 %s5, 4
      %s95 = int_to_ptr.hbm [resolvable:$true] %s94
      %97 = dma.vmem_to_hbm [thread:$0]  %s93, 128, %s95, [#allocation3]
    $region25: #{_mlp_forward_impl.1} parent=1 // pred_fallthru
      _
    // Predicated region
    $region26: #{_mlp_forward_impl.1} parent=1 // pred_check
      _
    $region27: #{_mlp_forward_impl.1} parent=1 // pred_check_branch
      %99 = sbr.rel (0) target = $region29
    $region28: #{_mlp_forward_impl.1} parent=1 // pred_region
      %101 = dma.done [#allocation3], 128
    $region29: #{_mlp_forward_impl.1} parent=1 // pred_fallthru
      _
    %102 = vsyncpa [#allocation3], 1

// kernel: _mlp_forward_impl.1
$region0: #{_mlp_forward_impl.1}
  #allocation0 [shape = 'u32[]', space=smem, size = 0x4, offset = 0x4, fixed_abs, tag = 'smem constant byte address 0x4 - core index']
  #allocation1 [shape = 'u32[72,128]{1,0:T(1,128)}', space=vmem, size = 0x9000, scoped, tag = 'internal scratch']
  %s0 = inlined_call_operand.vmem [shape: f32[8,16], index: 0, kind: input, shape index: {}]
  %s1 = inlined_call_operand.vmem [shape: f32[16,32], index: 1, kind: input, shape index: {}]
  %s2 = inlined_call_operand.vmem [shape: f32[1,32], index: 2, kind: input, shape index: {}]
  %s3 = inlined_call_operand.vmem [shape: f32[32,8], index: 3, kind: input, shape index: {}]
  %s4 = inlined_call_operand.vmem [shape: f32[1,8], index: 4, kind: input, shape index: {}]
  %s5 = inlined_call_operand.hbm [shape: f32[8,8], index: 5, kind: output, shape index: {}]
  %s6 = sld [smem:[#allocation0]]
  $region30: #{_mlp_forward_impl.1} parent=0
    _
  %s8 = ssub.s32 1, %s6
  %s9 = scalar_select 0, %s8, %s6
  $region1: #{_mlp_forward_impl.1} parent=0
    #allocation2 [shape = 'u8[4096]{0}', space=vmem, size = 0x1000, scoped, tag = 'output window, operand 0, single buffered']
    #allocation3 [shape = 's32[1]{0}', space=sflag, size = 0x4, scoped, tag = 'scoped memory for _mlp_forward_impl.1']
    %10 = vsyncpa [#allocation3], 0
    // Predicated region
    $region2: #{_mlp_forward_impl.1} parent=1 // pred_check
      _
    $region3: #{_mlp_forward_impl.1} parent=1 // pred_check_branch
      %12 = sbr.rel (0) target = $region5
    $region4: #{_mlp_forward_impl.1} parent=1 // pred_region
      _
    $region5: #{_mlp_forward_impl.1} parent=1 // pred_fallthru
      _
    // Predicated region
    $region6: #{_mlp_forward_impl.1} parent=1 // pred_check
      _
    $region7: #{_mlp_forward_impl.1} parent=1 // pred_check_branch
      %14 = sbr.rel (0) target = $region9
    $region8: #{_mlp_forward_impl.1} parent=1 // pred_region
      _
    $region9: #{_mlp_forward_impl.1} parent=1 // pred_fallthru
      _
    // Predicated region
    $region10: #{_mlp_forward_impl.1} parent=1 // pred_check
      _
    $region11: #{_mlp_forward_impl.1} parent=1 // pred_check_branch
      %16 = sbr.rel (0) target = $region13
    $region12: #{_mlp_forward_impl.1} parent=1 // pred_region
      _
    $region13: #{_mlp_forward_impl.1} parent=1 // pred_fallthru
      _
    // Predicated region
    $region14: #{_mlp_forward_impl.1} parent=1 // pred_check
      _
    $region15: #{_mlp_forward_impl.1} parent=1 // pred_check_branch
      %18 = sbr.rel (0) target = $region17
    $region16: #{_mlp_forward_impl.1} parent=1 // pred_region
      _
    $region17: #{_mlp_forward_impl.1} parent=1 // pred_fallthru
      _
    // Predicated region
    $region18: #{_mlp_forward_impl.1} parent=1 // pred_check
      _
    $region19: #{_mlp_forward_impl.1} parent=1 // pred_check_branch
      %20 = sbr.rel (0) target = $region21
    $region20: #{_mlp_forward_impl.1} parent=1 // pred_region
      _
    $region21: #{_mlp_forward_impl.1} parent=1 // pred_fallthru
      _
    %v21 = vld [vmem:[%s0] sm:$0xff]
    %v22 = vld [vmem:[%s1] sm:$0xff]
    %v23 = vld [vmem:[%s1 + $0x8] sm:$0xff]
    %v24 = vld [vmem:[%s2] sm:$0x1]
    %v26 = vperm.slane %v24, 0
    %vm28 = vcmask 130048
    %v30 = vsel %vm28, %v21, 0
    %32 = vmatpush.msra.mxu0 0.0
    %33 = vmatpush.msra.mxu0 0.0
    %34 = vmatpush.msra.mxu0 0.0
    %35 = vmatpush.msra.mxu0 0.0
    %36 = vmatpush.msra.mxu0 0.0
    %37 = vmatpush.msra.mxu0 0.0
    %38 = vmatpush.msra.mxu0 0.0
    %39 = vmatpush.msra.mxu0 0.0
    %40 = vmatpush.msra.mxu0 0.0
    %41 = vmatpush.msra.mxu0 0.0
    %42 = vmatpush.msra.mxu0 0.0
    %43 = vmatpush.msra.mxu0 0.0
    %44 = vmatpush.msra.mxu0 0.0
    %45 = vmatpush.msra.mxu0 0.0
    %46 = vmatpush.msra.mxu0 %v23
    %47 = vmatpush.msra.mxu0 %v22
    %48 = vmatmul.f32.gmra.mxu0 %v30
    %v49 = vpop.f32.mrf.mxu0
    %v50 = vadd.f32 %v26, %v49
    %51 = vdwg.mxu0
    %v52 = vmax.f32 %v50, 0.0
    %v53 = vld [vmem:[%s3] sm:$0xff]
    %v54 = vld [vmem:[%s3 + $0x8] sm:$0xff]
    %v55 = vld [vmem:[%s3 + $0x10] sm:$0xff]
    %v56 = vld [vmem:[%s3 + $0x18] sm:$0xff]
    %v57 = vld [vmem:[%s4] sm:$0x1]
    %v59 = vperm.slane %v57, 0
    %vm61 = vcmask 261120
    %v63 = vsel %vm61, %v52, 0
    %65 = vmatpush.msra.mxu0 0.0
    %66 = vmatpush.msra.mxu0 0.0
    %67 = vmatpush.msra.mxu0 0.0
    %68 = vmatpush.msra.mxu0 0.0
    %69 = vmatpush.msra.mxu0 0.0
    %70 = vmatpush.msra.mxu0 0.0
    %71 = vmatpush.msra.mxu0 0.0
    %72 = vmatpush.msra.mxu0 0.0
    %73 = vmatpush.msra.mxu0 0.0
    %74 = vmatpush.msra.mxu0 0.0
    %75 = vmatpush.msra.mxu0 0.0
    %76 = vmatpush.msra.mxu0 0.0
    %77 = vmatpush.msra.mxu0 %v56
    %78 = vmatpush.msra.mxu0 %v55
    %79 = vmatpush.msra.mxu0 %v54
    %80 = vmatpush.msra.mxu0 %v53
    %81 = vmatmul.f32.gmra.mxu0 %v63
    %v82 = vpop.f32.mrf.mxu0
    %v83 = vadd.f32 %v59, %v82
    %84 = vdwg.mxu0
    %vm85 = vcmask 64512
    %86 = vst.msk [vmem:[#allocation2] sm:$0xff] %vm85, %v83
    // Predicated region
    $region22: #{_mlp_forward_impl.1} parent=1 // pred_check
      _
    $region23: #{_mlp_forward_impl.1} parent=1 // pred_check_branch
      %88 = sbr.rel (0) target = $region25
    $region24: #{_mlp_forward_impl.1} parent=1 // pred_region
      %90 = vsyncadd [#allocation3], 0
      %s92 = sshll.u32 [#allocation2], 4
      %s93 = int_to_ptr.vmem [resolvable:$true] %s92
      %s94 = sshll.u32 %s5, 4
      %s95 = int_to_ptr.hbm [resolvable:$true] %s94
      %97 = dma.vmem_to_hbm [thread:$0]  %s93, 128, %s95, [#allocation3]
    $region25: #{_mlp_forward_impl.1} parent=1 // pred_fallthru
      _
    // Predicated region
    $region26: #{_mlp_forward_impl.1} parent=1 // pred_check
      _
    $region27: #{_mlp_forward_impl.1} parent=1 // pred_check_branch
      %99 = sbr.rel (0) target = $region29
    $region28: #{_mlp_forward_impl.1} parent=1 // pred_region
      %101 = dma.done [#allocation3], 128
    $region29: #{_mlp_forward_impl.1} parent=1 // pred_fallthru
      _
    %102 = vsyncpa [#allocation3], 1

</llo_original>
